<compile_context>
chip_gen: v7x
topology: tpu7x:2x2x1
jax: 0.10.0
libtpu: 0.0.40
codegen_flags: <defaults>
</compile_context>

<pallas_src>
import functools

import jax
import jax.numpy as jnp
from jax.experimental import pallas as pl
from jax.experimental.pallas import tpu as pltpu


def _round_up(n, m):
    return ((n + m - 1) // m) * m


# ----------------------------------------------------------------------------
# Quantizer helpers (pure jnp, f32): used both inside the kernel (activation /
# output fake-quant) and in the hoisted weight preparation.
# `bit` is a static Python int.
# ----------------------------------------------------------------------------
def _quant_symmetric(x, bit):
    """Symmetric uniform fake-quant, threshold = 0.5 * max(|x|)."""
    if bit is None or bit <= 0:
        return x
    levels = float(2 ** (bit - 1) - 1)
    th = 0.5 * jnp.max(jnp.abs(x))
    step = jnp.where(th > 0.0, th / levels, 1.0)   # guard all-zero tensors
    inv_step = 1.0 / step                          # exact scalar divide
    q = jnp.clip(jnp.round(x * inv_step), -levels, levels)
    return q * step


def _quant_unsigned(x, bit):
    """All-positive (unsigned) uniform fake-quant, threshold = 0.5 * max(x).

    Only valid for nonnegative inputs (here: post-ReLU activations)."""
    if bit is None or bit <= 0:
        return x
    levels = float(2 ** bit - 1)
    th = 0.5 * jnp.max(x)
    step = jnp.where(th > 0.0, th / levels, 1.0)
    inv_step = 1.0 / step
    q = jnp.clip(jnp.round(x * inv_step), 0.0, levels)
    return q * step


# ----------------------------------------------------------------------------
# Fused forward kernel (one batch tile per grid step).
#   x_ref  : (TB, D)      bf16, zero-padded input tile
#   w_ref  : (4, D, D)    bf16 [w1 | w2 | w3_q | w4_q], zero-padded,
#                         pre-quantized fc3/fc4 weights (constant across grid)
#   out_ref: (TB, 3*D)    f32  [logits_pad | x1_pad | x2_pad], lane-dense
# ----------------------------------------------------------------------------
def _speech_fc_kernel(x_ref, w_ref, out_ref, *, quant_in, quant_out, D):
    bf16 = jnp.bfloat16
    x = x_ref[...]                                               # bf16

    # fc1 + relu  (bf16 MXU, f32 accumulate)
    h = jnp.dot(x, w_ref[0], preferred_element_type=jnp.float32)
    h = jnp.maximum(h, 0.0)

    # fc2 + relu  -> x1 (padded columns are exactly zero)
    x1 = jnp.maximum(
        jnp.dot(h.astype(bf16), w_ref[1], preferred_element_type=jnp.float32),
        0.0)

    # fc3 = linear_quant_noise: unsigned fake-quant of activations (f32),
    # matmul with pre-quantized weights, symmetric output fake-quant, relu.
    a_q = _quant_unsigned(x1, quant_in)
    y = jnp.dot(a_q.astype(bf16), w_ref[2], preferred_element_type=jnp.float32)
    x2 = jnp.maximum(_quant_symmetric(y, quant_out), 0.0)

    # fc4 (same quantized-linear recipe), no final activation.
    a_q = _quant_unsigned(x2, quant_in)
    y = jnp.dot(a_q.astype(bf16), w_ref[3], preferred_element_type=jnp.float32)
    logits = _quant_symmetric(y, quant_out)

    # Single lane-dense output slab: three aligned 128-multiple-wide stores.
    out_ref[:, 0:D] = logits
    out_ref[:, D:2 * D] = x1
    out_ref[:, 2 * D:3 * D] = x2


# ----------------------------------------------------------------------------
# Parameter init (kaiming-normal, fan_in, relu gain), weights stored already
# transposed as [in_features, out_features] so every layer is x @ W on the MXU.
# ----------------------------------------------------------------------------
def init_params(key, input_size, hidden_size, num_classes):
    k1, k2, k3, k4 = jax.random.split(key, 4)

    def kaiming(k, fan_in, fan_out):
        std = (2.0 / fan_in) ** 0.5
        return (std * jax.random.normal(k, (fan_in, fan_out))).astype(jnp.float32)

    w1 = kaiming(k1, input_size, hidden_size)   # fc1
    w2 = kaiming(k2, hidden_size, hidden_size)  # fc2
    w3 = kaiming(k3, hidden_size, 128)          # fc3
    w4 = kaiming(k4, 128, num_classes)          # fc4
    return w1, w2, w3, w4


# ----------------------------------------------------------------------------
# One-time weight preparation (hoisted off the per-call path):
# fake-quantize fc3/fc4 weights (f32), zero-pad all four weights to a common
# (D, D) tile, stack into a (4, D, D) slab and cast to bf16.
# ----------------------------------------------------------------------------
def prepare_weight_slab(w1, w2, w3, w4, *, quant_w=4):
    input_size, hidden_size = w1.shape
    num_classes = w4.shape[1]
    D = _round_up(max(input_size, hidden_size, 128, num_classes), 128)

    w3_q = _quant_symmetric(w3.astype(jnp.float32), quant_w)
    w4_q = _quant_symmetric(w4.astype(jnp.float32), quant_w)

    def pad2(w):
        return jnp.zeros((D, D), jnp.float32).at[:w.shape[0], :w.shape[1]].set(
            w.astype(jnp.float32))

    slab = jnp.stack([pad2(w1), pad2(w2), pad2(w3_q), pad2(w4_q)], axis=0)
    return slab.astype(jnp.bfloat16)


# ----------------------------------------------------------------------------
# Forward wrapper: per-call work is only x pad/cast + pallas_call + output
# slicing.  Batch is a grid axis ("parallel"); the weight slab index_map is
# constant so the slab is DMA'd once and stays VMEM-resident.
# ----------------------------------------------------------------------------
def speech_model_fc_qn(x, w_slab, *, hidden_size, num_classes,
                       quant_in=4, quant_out=8, block_b=256):
    """Returns (logits, x1, x2) exactly like the PyTorch module's forward."""
    batch, input_size = x.shape
    D = w_slab.shape[-1]

    # Batch tile: whole batch in one tile when small (keeps the quantizer
    # max-thresholds whole-batch, i.e. exact PyTorch semantics); 256-row tiles
    # when large (fills the v6e/v7x MXU; use block_b=128 on v5e).
    TB = min(_round_up(batch, 8), block_b)
    batch_pad = _round_up(batch, TB)
    num_tiles = batch_pad // TB
    # TODO(synk): when num_tiles > 1 the activation/output quant thresholds
    # (0.5*max) become per-batch-tile instead of whole-batch; a two-pass
    # (global max in SMEM, then quantize) would restore exact semantics.

    x_pad = jnp.zeros((batch_pad, D), jnp.float32).at[:batch, :input_size].set(
        x.astype(jnp.float32)).astype(jnp.bfloat16)

    kernel = functools.partial(
        _speech_fc_kernel, quant_in=quant_in, quant_out=quant_out, D=D)

    out_slab = pl.pallas_call(
        kernel,
        grid=(num_tiles,),
        in_specs=[
            pl.BlockSpec((TB, D), lambda b: (b, 0)),
            pl.BlockSpec((4, D, D), lambda b: (0, 0, 0)),   # constant: resident
        ],
        out_specs=pl.BlockSpec((TB, 3 * D), lambda b: (b, 0)),
        out_shape=jax.ShapeDtypeStruct((batch_pad, 3 * D), jnp.float32),
        compiler_params=pltpu.CompilerParams(
            dimension_semantics=("parallel",)),   # v7x: shard batch over 2 TCs
    )(x_pad, w_slab)

    logits = out_slab[:batch, :num_classes]
    x1 = out_slab[:batch, D:D + hidden_size]
    x2 = out_slab[:batch, 2 * D:2 * D + 128]
    return logits, x1, x2


# ----------------------------------------------------------------------------
# Pure-JAX reference (same math, unpadded, identical bf16 matmul-operand
# casts) for a sanity check.
# ----------------------------------------------------------------------------
def _reference(x, w1, w2, w3, w4, *, quant_w=4, quant_in=4, quant_out=8):
    bf16, f32 = jnp.bfloat16, jnp.float32
    w1b = w1.astype(bf16)
    w2b = w2.astype(bf16)
    w3b = _quant_symmetric(w3.astype(f32), quant_w).astype(bf16)
    w4b = _quant_symmetric(w4.astype(f32), quant_w).astype(bf16)

    h = jnp.maximum(jnp.dot(x.astype(bf16), w1b, preferred_element_type=f32), 0.0)
    x1 = jnp.maximum(jnp.dot(h.astype(bf16), w2b, preferred_element_type=f32), 0.0)
    y = jnp.dot(_quant_unsigned(x1, quant_in).astype(bf16), w3b,
                preferred_element_type=f32)
    x2 = jnp.maximum(_quant_symmetric(y, quant_out), 0.0)
    y = jnp.dot(_quant_unsigned(x2, quant_in).astype(bf16), w4b,
                preferred_element_type=f32)
    return _quant_symmetric(y, quant_out), x1, x2


if __name__ == "__main__":
    # Small, deterministic example consistent with the FC speech model:
    # batch=8, input_size=32, hidden_size=32, num_classes=12.
    batch, input_size, hidden_size, num_classes = 8, 32, 32, 12

    key = jax.random.PRNGKey(0)
    k_params, k_x = jax.random.split(key)

    w1, w2, w3, w4 = init_params(k_params, input_size, hidden_size, num_classes)
    x = jax.random.normal(k_x, (batch, input_size), dtype=jnp.float32)

    # Weight slab built ONCE (hoisted off the per-forward-call path).
    w_slab = jax.block_until_ready(prepare_weight_slab(w1, w2, w3, w4, quant_w=4))

    # Jitted forward: repeated calls only pad x, launch the kernel, slice out.
    fwd = jax.jit(functools.partial(
        speech_model_fc_qn, hidden_size=hidden_size, num_classes=num_classes,
        quant_in=4, quant_out=8))

    logits, x1, x2 = fwd(x, w_slab)
    jax.block_until_ready((logits, x1, x2))

    assert logits.shape == (batch, num_classes)
    assert x1.shape == (batch, hidden_size)
    assert x2.shape == (batch, 128)
    assert bool(jnp.all(jnp.isfinite(logits)))

    # Sanity check against the pure-JAX reference (identical bf16 casts; the
    # tolerance only absorbs accumulation-order noise / rare quant-bin ties).
    r_logits, r_x1, r_x2 = _reference(
        x, w1, w2, w3, w4, quant_w=4, quant_in=4, quant_out=8)
    assert float(jnp.max(jnp.abs(logits - r_logits))) < 5e-2
    assert float(jnp.max(jnp.abs(x1 - r_x1))) < 5e-2
    assert float(jnp.max(jnp.abs(x2 - r_x2))) < 5e-2

    print("KERNEL_OK")
</pallas_src>

<mosaic_0001>
module attributes {stable_mosaic.version = 11 : i64} {
  func.func @_speech_fc_kernel(%arg0: i32, %arg1: memref<8x128xbf16, #tpu.memory_space<vmem>>, %arg2: memref<4x128x128xbf16, #tpu.memory_space<vmem>>, %arg3: memref<8x384xf32, #tpu.memory_space<vmem>>) attributes {dimension_semantics = [#tpu.dimension_semantics<parallel>], iteration_bounds = array<i64: 1>, scalar_prefetch = 0 : i64, scratch_operands = 0 : i64, tpu.core_type = #tpu.core_type<tc>, window_params = [{transform_indices = @transform_0, window_bounds = array<i64: 8, 128>}, {pipeline_mode = #tpu.pipeline_mode<synchronous>, transform_indices = @transform_1, window_bounds = array<i64: 4, 128, 128>}, {transform_indices = @transform_2, window_bounds = array<i64: 8, 384>}]} {
    %c0 = arith.constant 0 : index
    %c0_0 = arith.constant 0 : index
    %0 = vector.load %arg1[%c0, %c0_0] : memref<8x128xbf16, #tpu.memory_space<vmem>>, vector<8x128xbf16>
    %c0_1 = arith.constant 0 : index
    %c0_2 = arith.constant 0 : index
    %c0_3 = arith.constant 0 : index
    %1 = vector.load %arg2[%c0_1, %c0_2, %c0_3] : memref<4x128x128xbf16, #tpu.memory_space<vmem>>, vector<1x128x128xbf16>
    %2 = vector.shape_cast %1 : vector<1x128x128xbf16> to vector<128x128xbf16>
    %cst = arith.constant dense<0.000000e+00> : vector<8x128xf32>
    %3 = tpu.matmul %0, %2, %cst {dimension_numbers = #tpu.dot_dimension_numbers<[1], [0], [0], [1], [0, 0, 1, 1], [], []>} : vector<8x128xbf16>, vector<128x128xbf16>, vector<8x128xf32> -> vector<8x128xf32>
    %cst_4 = arith.constant 0.000000e+00 : f32
    %4 = vector.broadcast %cst_4 : f32 to vector<8x128xf32>
    %5 = arith.maximumf %3, %4 : vector<8x128xf32>
    %6 = arith.truncf %5 : vector<8x128xf32> to vector<8x128xbf16>
    %c1 = arith.constant 1 : index
    %c0_5 = arith.constant 0 : index
    %c0_6 = arith.constant 0 : index
    %7 = vector.load %arg2[%c1, %c0_5, %c0_6] : memref<4x128x128xbf16, #tpu.memory_space<vmem>>, vector<1x128x128xbf16>
    %8 = vector.shape_cast %7 : vector<1x128x128xbf16> to vector<128x128xbf16>
    %cst_7 = arith.constant dense<0.000000e+00> : vector<8x128xf32>
    %9 = tpu.matmul %6, %8, %cst_7 {dimension_numbers = #tpu.dot_dimension_numbers<[1], [0], [0], [1], [0, 0, 1, 1], [], []>} : vector<8x128xbf16>, vector<128x128xbf16>, vector<8x128xf32> -> vector<8x128xf32>
    %cst_8 = arith.constant 0.000000e+00 : f32
    %10 = vector.broadcast %cst_8 : f32 to vector<8x128xf32>
    %11 = arith.maximumf %9, %10 : vector<8x128xf32>
    %12 = vector.shape_cast %11 : vector<8x128xf32> to vector<1x8x128xf32>
    %cst_9 = arith.constant dense<0xFF800000> : vector<1xf32>
    %13 = vector.multi_reduction <maximumf>, %12, %cst_9 [1, 2] : vector<1x8x128xf32> to vector<1xf32>
    %14 = vector.shape_cast %13 : vector<1xf32> to vector<1x1x1xf32>
    %15 = vector.extract %14[0, 0, 0] : f32 from vector<1x1x1xf32>
    %cst_10 = arith.constant 5.000000e-01 : f32
    %16 = arith.mulf %cst_10, %15 : f32
    %cst_11 = arith.constant 0.000000e+00 : f32
    %17 = arith.cmpf ogt, %16, %cst_11 : f32
    %cst_12 = arith.constant 1.500000e+01 : f32
    %18 = arith.divf %16, %cst_12 : f32
    %cst_13 = arith.constant 1.000000e+00 : f32
    %19 = arith.select %17, %18, %cst_13 : f32
    %cst_14 = arith.constant 1.000000e+00 : f32
    %20 = arith.divf %cst_14, %19 : f32
    %21 = vector.broadcast %20 : f32 to vector<8x128xf32>
    %22 = arith.mulf %11, %21 : vector<8x128xf32>
    %23 = math.roundeven %22 : vector<8x128xf32>
    %cst_15 = arith.constant 0.000000e+00 : f32
    %cst_16 = arith.constant 1.500000e+01 : f32
    %24 = vector.broadcast %cst_15 : f32 to vector<8x128xf32>
    %25 = arith.maximumf %24, %23 : vector<8x128xf32>
    %26 = vector.broadcast %cst_16 : f32 to vector<8x128xf32>
    %27 = arith.minimumf %26, %25 : vector<8x128xf32>
    %28 = vector.broadcast %19 : f32 to vector<8x128xf32>
    %29 = arith.mulf %27, %28 : vector<8x128xf32>
    %30 = arith.truncf %29 : vector<8x128xf32> to vector<8x128xbf16>
    %c2 = arith.constant 2 : index
    %c0_17 = arith.constant 0 : index
    %c0_18 = arith.constant 0 : index
    %31 = vector.load %arg2[%c2, %c0_17, %c0_18] : memref<4x128x128xbf16, #tpu.memory_space<vmem>>, vector<1x128x128xbf16>
    %32 = vector.shape_cast %31 : vector<1x128x128xbf16> to vector<128x128xbf16>
    %cst_19 = arith.constant dense<0.000000e+00> : vector<8x128xf32>
    %33 = tpu.matmul %30, %32, %cst_19 {dimension_numbers = #tpu.dot_dimension_numbers<[1], [0], [0], [1], [0, 0, 1, 1], [], []>} : vector<8x128xbf16>, vector<128x128xbf16>, vector<8x128xf32> -> vector<8x128xf32>
    %34 = math.absf %33 : vector<8x128xf32>
    %35 = vector.shape_cast %34 : vector<8x128xf32> to vector<1x8x128xf32>
    %cst_20 = arith.constant dense<0xFF800000> : vector<1xf32>
    %36 = vector.multi_reduction <maximumf>, %35, %cst_20 [1, 2] : vector<1x8x128xf32> to vector<1xf32>
    %37 = vector.shape_cast %36 : vector<1xf32> to vector<1x1x1xf32>
    %38 = vector.extract %37[0, 0, 0] : f32 from vector<1x1x1xf32>
    %cst_21 = arith.constant 5.000000e-01 : f32
    %39 = arith.mulf %cst_21, %38 : f32
    %cst_22 = arith.constant 0.000000e+00 : f32
    %40 = arith.cmpf ogt, %39, %cst_22 : f32
    %cst_23 = arith.constant 1.270000e+02 : f32
    %41 = arith.divf %39, %cst_23 : f32
    %cst_24 = arith.constant 1.000000e+00 : f32
    %42 = arith.select %40, %41, %cst_24 : f32
    %cst_25 = arith.constant 1.000000e+00 : f32
    %43 = arith.divf %cst_25, %42 : f32
    %44 = vector.broadcast %43 : f32 to vector<8x128xf32>
    %45 = arith.mulf %33, %44 : vector<8x128xf32>
    %46 = math.roundeven %45 : vector<8x128xf32>
    %cst_26 = arith.constant -1.270000e+02 : f32
    %cst_27 = arith.constant 1.270000e+02 : f32
    %47 = vector.broadcast %cst_26 : f32 to vector<8x128xf32>
    %48 = arith.maximumf %47, %46 : vector<8x128xf32>
    %49 = vector.broadcast %cst_27 : f32 to vector<8x128xf32>
    %50 = arith.minimumf %49, %48 : vector<8x128xf32>
    %51 = vector.broadcast %42 : f32 to vector<8x128xf32>
    %52 = arith.mulf %50, %51 : vector<8x128xf32>
    %cst_28 = arith.constant 0.000000e+00 : f32
    %53 = vector.broadcast %cst_28 : f32 to vector<8x128xf32>
    %54 = arith.maximumf %52, %53 : vector<8x128xf32>
    %55 = vector.shape_cast %54 : vector<8x128xf32> to vector<1x8x128xf32>
    %cst_29 = arith.constant dense<0xFF800000> : vector<1xf32>
    %56 = vector.multi_reduction <maximumf>, %55, %cst_29 [1, 2] : vector<1x8x128xf32> to vector<1xf32>
    %57 = vector.shape_cast %56 : vector<1xf32> to vector<1x1x1xf32>
    %58 = vector.extract %57[0, 0, 0] : f32 from vector<1x1x1xf32>
    %cst_30 = arith.constant 5.000000e-01 : f32
    %59 = arith.mulf %cst_30, %58 : f32
    %cst_31 = arith.constant 0.000000e+00 : f32
    %60 = arith.cmpf ogt, %59, %cst_31 : f32
    %cst_32 = arith.constant 1.500000e+01 : f32
    %61 = arith.divf %59, %cst_32 : f32
    %cst_33 = arith.constant 1.000000e+00 : f32
    %62 = arith.select %60, %61, %cst_33 : f32
    %cst_34 = arith.constant 1.000000e+00 : f32
    %63 = arith.divf %cst_34, %62 : f32
    %64 = vector.broadcast %63 : f32 to vector<8x128xf32>
    %65 = arith.mulf %54, %64 : vector<8x128xf32>
    %66 = math.roundeven %65 : vector<8x128xf32>
    %cst_35 = arith.constant 0.000000e+00 : f32
    %cst_36 = arith.constant 1.500000e+01 : f32
    %67 = vector.broadcast %cst_35 : f32 to vector<8x128xf32>
    %68 = arith.maximumf %67, %66 : vector<8x128xf32>
    %69 = vector.broadcast %cst_36 : f32 to vector<8x128xf32>
    %70 = arith.minimumf %69, %68 : vector<8x128xf32>
    %71 = vector.broadcast %62 : f32 to vector<8x128xf32>
    %72 = arith.mulf %70, %71 : vector<8x128xf32>
    %73 = arith.truncf %72 : vector<8x128xf32> to vector<8x128xbf16>
    %c3 = arith.constant 3 : index
    %c0_37 = arith.constant 0 : index
    %c0_38 = arith.constant 0 : index
    %74 = vector.load %arg2[%c3, %c0_37, %c0_38] : memref<4x128x128xbf16, #tpu.memory_space<vmem>>, vector<1x128x128xbf16>
    %75 = vector.shape_cast %74 : vector<1x128x128xbf16> to vector<128x128xbf16>
    %cst_39 = arith.constant dense<0.000000e+00> : vector<8x128xf32>
    %76 = tpu.matmul %73, %75, %cst_39 {dimension_numbers = #tpu.dot_dimension_numbers<[1], [0], [0], [1], [0, 0, 1, 1], [], []>} : vector<8x128xbf16>, vector<128x128xbf16>, vector<8x128xf32> -> vector<8x128xf32>
    %77 = math.absf %76 : vector<8x128xf32>
    %78 = vector.shape_cast %77 : vector<8x128xf32> to vector<1x8x128xf32>
    %cst_40 = arith.constant dense<0xFF800000> : vector<1xf32>
    %79 = vector.multi_reduction <maximumf>, %78, %cst_40 [1, 2] : vector<1x8x128xf32> to vector<1xf32>
    %80 = vector.shape_cast %79 : vector<1xf32> to vector<1x1x1xf32>
    %81 = vector.extract %80[0, 0, 0] : f32 from vector<1x1x1xf32>
    %cst_41 = arith.constant 5.000000e-01 : f32
    %82 = arith.mulf %cst_41, %81 : f32
    %cst_42 = arith.constant 0.000000e+00 : f32
    %83 = arith.cmpf ogt, %82, %cst_42 : f32
    %cst_43 = arith.constant 1.270000e+02 : f32
    %84 = arith.divf %82, %cst_43 : f32
    %cst_44 = arith.constant 1.000000e+00 : f32
    %85 = arith.select %83, %84, %cst_44 : f32
    %cst_45 = arith.constant 1.000000e+00 : f32
    %86 = arith.divf %cst_45, %85 : f32
    %87 = vector.broadcast %86 : f32 to vector<8x128xf32>
    %88 = arith.mulf %76, %87 : vector<8x128xf32>
    %89 = math.roundeven %88 : vector<8x128xf32>
    %cst_46 = arith.constant -1.270000e+02 : f32
    %cst_47 = arith.constant 1.270000e+02 : f32
    %90 = vector.broadcast %cst_46 : f32 to vector<8x128xf32>
    %91 = arith.maximumf %90, %89 : vector<8x128xf32>
    %92 = vector.broadcast %cst_47 : f32 to vector<8x128xf32>
    %93 = arith.minimumf %92, %91 : vector<8x128xf32>
    %94 = vector.broadcast %85 : f32 to vector<8x128xf32>
    %95 = arith.mulf %93, %94 : vector<8x128xf32>
    %c0_48 = arith.constant 0 : index
    %c0_49 = arith.constant 0 : index
    %96 = vector.load %arg3[%c0_48, %c0_49] : memref<8x384xf32, #tpu.memory_space<vmem>>, vector<8x128xf32>
    tpu.vector_store %arg3[%c0_48, %c0_49], %95 {strides = array<i32>} : memref<8x384xf32, #tpu.memory_space<vmem>>, vector<8x128xf32>,
    %c0_50 = arith.constant 0 : index
    %c128 = arith.constant 128 : index
    %97 = vector.load %arg3[%c0_50, %c128] : memref<8x384xf32, #tpu.memory_space<vmem>>, vector<8x128xf32>
    tpu.vector_store %arg3[%c0_50, %c128], %11 {strides = array<i32>} : memref<8x384xf32, #tpu.memory_space<vmem>>, vector<8x128xf32>,
    %c0_51 = arith.constant 0 : index
    %c256 = arith.constant 256 : index
    %98 = vector.load %arg3[%c0_51, %c256] : memref<8x384xf32, #tpu.memory_space<vmem>>, vector<8x128xf32>
    tpu.vector_store %arg3[%c0_51, %c256], %54 {strides = array<i32>} : memref<8x384xf32, #tpu.memory_space<vmem>>, vector<8x128xf32>,
    return
  }
  func.func @transform_0(%arg0: i32) -> (i32, i32) {
    %c0_i32 = arith.constant 0 : i32
    %c0_i32_0 = arith.constant 0 : i32
    return %arg0, %c0_i32 : i32, i32
  }
  func.func @transform_1(%arg0: i32) -> (i32, i32, i32) {
    %c0_i32 = arith.constant 0 : i32
    %c0_i32_0 = arith.constant 0 : i32
    %c0_i32_1 = arith.constant 0 : i32
    %c0_i32_2 = arith.constant 0 : i32
    return %c0_i32, %c0_i32_0, %c0_i32_1 : i32, i32, i32
  }
  func.func @transform_2(%arg0: i32) -> (i32, i32) {
    %c0_i32 = arith.constant 0 : i32
    %c0_i32_0 = arith.constant 0 : i32
    return %arg0, %c0_i32 : i32, i32
  }
}

</mosaic_0001>

<llo_original>
// kernel: speech_model_fc_qn.1
$region0: #{speech_model_fc_qn.1}
  #allocation0 [shape = 'u32[]', space=smem, size = 0x4, offset = 0x4, fixed_abs, tag = 'smem constant byte address 0x4 - core index']
  #allocation1 [shape = 'u32[144,128]{1,0:T(1,128)}', space=vmem, size = 0x12000, scoped, tag = 'internal scratch']
  %s0 = inlined_call_operand.vmem [shape: bf16[8,128], index: 0, kind: input, shape index: {}]
  %s1 = inlined_call_operand.hbm [shape: bf16[4,128,128], index: 1, kind: input, shape index: {}]
  %s2 = inlined_call_operand.vmem [shape: f32[8,384], index: 2, kind: output, shape index: {}]
  %s3 = sld [smem:[#allocation0]]
  $region22: #{speech_model_fc_qn.1} parent=0
    _
  %s5 = ssub.s32 1, %s3
  %s6 = scalar_select 0, %s5, %s3
  $region1: #{speech_model_fc_qn.1} parent=0
    #allocation2 [shape = 'u8[131072]{0}', space=vmem, size = 0x20000, scoped, tag = 'input window, operand 1, single buffered']
    #allocation3 [shape = 's32[1]{0}', space=sflag, size = 0x4, scoped, tag = 'scoped memory for speech_model_fc_qn.1']
    %7 = vsyncpa [#allocation3], 0
    // Predicated region
    $region2: #{speech_model_fc_qn.1} parent=1 // pred_check
      _
    $region3: #{speech_model_fc_qn.1} parent=1 // pred_check_branch
      %9 = sbr.rel (0) target = $region5
    $region4: #{speech_model_fc_qn.1} parent=1 // pred_region
      _
    $region5: #{speech_model_fc_qn.1} parent=1 // pred_fallthru
      _
    // Predicated region
    $region6: #{speech_model_fc_qn.1} parent=1 // pred_check
      _
    $region7: #{speech_model_fc_qn.1} parent=1 // pred_check_branch
      %11 = sbr.rel (0) target = $region9
    $region8: #{speech_model_fc_qn.1} parent=1 // pred_region
      %s13 = ssub.s32 4096, 4096
      %14 = vsyncadd [#allocation3], %s13
      %s15 = sshll.u32 [#allocation2], 4
      %s16 = int_to_ptr.vmem [resolvable:$true] %s15
      %21 = dma.hbm_to_vmem [thread:$0]  %s1, 4096, %s16, [#allocation3], 64, 64, 4
    $region9: #{speech_model_fc_qn.1} parent=1 // pred_fallthru
      _
    // Predicated region
    $region10: #{speech_model_fc_qn.1} parent=1 // pred_check
      _
    $region11: #{speech_model_fc_qn.1} parent=1 // pred_check_branch
      %23 = sbr.rel (0) target = $region13
    $region12: #{speech_model_fc_qn.1} parent=1 // pred_region
      %24 = dma.done [#allocation3], 4096
    $region13: #{speech_model_fc_qn.1} parent=1 // pred_fallthru
      _
    %v26 = vld [vmem:[%s0] sm:$0xf]
    %v27 = vld [vmem:[#allocation2] sm:$0xf]
    %v28 = vld [vmem:[#allocation2 + $0x4] sm:$0xf]
    %v29 = vld [vmem:[#allocation2 + $0x8] sm:$0xf]
    %v30 = vld [vmem:[#allocation2 + $0xc] sm:$0xf]
    %v31 = vld [vmem:[#allocation2 + $0x10] sm:$0xf]
    %v32 = vld [vmem:[#allocation2 + $0x14] sm:$0xf]
    %v33 = vld [vmem:[#allocation2 + $0x18] sm:$0xf]
    %v34 = vld [vmem:[#allocation2 + $0x1c] sm:$0xf]
    %v35 = vld [vmem:[#allocation2 + $0x20] sm:$0xf]
    %v36 = vld [vmem:[#allocation2 + $0x24] sm:$0xf]
    %v37 = vld [vmem:[#allocation2 + $0x28] sm:$0xf]
    %v38 = vld [vmem:[#allocation2 + $0x2c] sm:$0xf]
    %v39 = vld [vmem:[#allocation2 + $0x30] sm:$0xf]
    %v40 = vld [vmem:[#allocation2 + $0x34] sm:$0xf]
    %v41 = vld [vmem:[#allocation2 + $0x38] sm:$0xf]
    %v42 = vld [vmem:[#allocation2 + $0x3c] sm:$0xf]
    %v59 = vunpack.c.l.b16 %v27
    %v60 = vunpack.c.l.b16 %v28
    %v61 = vunpack.c.l.b16 %v29
    %v62 = vunpack.c.l.b16 %v30
    %v63 = vunpack.c.l.b16 %v31
    %v64 = vunpack.c.l.b16 %v32
    %v65 = vunpack.c.l.b16 %v33
    %v66 = vunpack.c.l.b16 %v34
    %v67 = vunpack.c.l.b16 %v35
    %v68 = vunpack.c.l.b16 %v36
    %v69 = vunpack.c.l.b16 %v37
    %v70 = vunpack.c.l.b16 %v38
    %v71 = vunpack.c.l.b16 %v39
    %v72 = vunpack.c.l.b16 %v40
    %v73 = vunpack.c.l.b16 %v41
    %v74 = vunpack.c.l.b16 %v42
    %v75 = vpack.c.b16 %v60, %v59
    %v76 = vpack.c.b16 %v62, %v61
    %v77 = vpack.c.b16 %v64, %v63
    %v78 = vpack.c.b16 %v66, %v65
    %v79 = vpack.c.b16 %v68, %v67
    %v80 = vpack.c.b16 %v70, %v69
    %v81 = vpack.c.b16 %v72, %v71
    %v82 = vpack.c.b16 %v74, %v73
    %91 = vmatprep.subr.bf16.mxu0 0
    %92 = vmatpush1.bf16.msra.mxu0 %v75
    %93 = vmatprep.subr.bf16.mxu0 0
    %94 = vmatpush1.bf16.msra.mxu0 %v76
    %95 = vmatprep.subr.bf16.mxu0 0
    %96 = vmatpush1.bf16.msra.mxu0 %v77
    %97 = vmatprep.subr.bf16.mxu0 0
    %98 = vmatpush1.bf16.msra.mxu0 %v78
    %99 = vmatprep.subr.bf16.mxu0 0
    %100 = vmatpush1.bf16.msra.mxu0 %v79
    %101 = vmatprep.subr.bf16.mxu0 0
    %102 = vmatpush1.bf16.msra.mxu0 %v80
    %103 = vmatprep.subr.bf16.mxu0 0
    %104 = vmatpush1.bf16.msra.mxu0 %v81
    %105 = vmatprep.subr.bf16.mxu0 0
    %106 = vmatpush1.bf16.msra.mxu0 %v82
    %107 = vmatprep.subr.bf16.mxu0 0
    %108 = vmatpush1.bf16.msra.mxu0 0
    %109 = vmatprep.subr.bf16.mxu0 0
    %110 = vmatpush1.bf16.msra.mxu0 0
    %111 = vmatprep.subr.bf16.mxu0 0
    %112 = vmatpush1.bf16.msra.mxu0 0
    %113 = vmatprep.subr.bf16.mxu0 0
    %114 = vmatpush1.bf16.msra.mxu0 0
    %115 = vmatprep.subr.bf16.mxu0 0
    %116 = vmatpush1.bf16.msra.mxu0 0
    %117 = vmatprep.subr.bf16.mxu0 0
    %118 = vmatpush1.bf16.msra.mxu0 0
    %119 = vmatprep.subr.bf16.mxu0 0
    %120 = vmatpush1.bf16.msra.mxu0 0
    %121 = vmatprep.subr.bf16.mxu0 0
    %122 = vmatpush1.bf16.msra.mxu0 0
    %123 = vmatprep.mubr.bf16.mxu0 0
    %124 = vmatmul.mubr.bf16.gmra.mrb[0].mxu0 %v26
    %v125 = vpop.f32.mrb[0].mxu0
    %v126 = vadd.f32 0.0, %v125
    %v127 = vpop.f32.mrb[0].mxu0
    %v128 = vpop.f32.mrb[0].mxu0
    %v129 = vpop.f32.mrb[0].mxu0
    %130 = vdwg.mxu0
    %v131 = vmax.f32 %v126, 0.0
    %v132 = vpack.c.bf16 %v131, %v131
    %s133 = scalar_lea.vmem [#allocation2], 64
    %v134 = vld [vmem:[%s133] sm:$0xf]
    %v135 = vld [vmem:[%s133 + $0x4] sm:$0xf]
    %v136 = vld [vmem:[%s133 + $0x8] sm:$0xf]
    %v137 = vld [vmem:[%s133 + $0xc] sm:$0xf]
    %v138 = vld [vmem:[%s133 + $0x10] sm:$0xf]
    %v139 = vld [vmem:[%s133 + $0x14] sm:$0xf]
    %v140 = vld [vmem:[%s133 + $0x18] sm:$0xf]
    %v141 = vld [vmem:[%s133 + $0x1c] sm:$0xf]
    %v142 = vld [vmem:[%s133 + $0x20] sm:$0xf]
    %v143 = vld [vmem:[%s133 + $0x24] sm:$0xf]
    %v144 = vld [vmem:[%s133 + $0x28] sm:$0xf]
    %v145 = vld [vmem:[%s133 + $0x2c] sm:$0xf]
    %v146 = vld [vmem:[%s133 + $0x30] sm:$0xf]
    %v147 = vld [vmem:[%s133 + $0x34] sm:$0xf]
    %v148 = vld [vmem:[%s133 + $0x38] sm:$0xf]
    %v149 = vld [vmem:[%s133 + $0x3c] sm:$0xf]
    %v166 = vunpack.c.l.b16 %v134
    %v167 = vunpack.c.l.b16 %v135
    %v168 = vunpack.c.l.b16 %v136
    %v169 = vunpack.c.l.b16 %v137
    %v170 = vunpack.c.l.b16 %v138
    %v171 = vunpack.c.l.b16 %v139
    %v172 = vunpack.c.l.b16 %v140
    %v173 = vunpack.c.l.b16 %v141
    %v174 = vunpack.c.l.b16 %v142
    %v175 = vunpack.c.l.b16 %v143
    %v176 = vunpack.c.l.b16 %v144
    %v177 = vunpack.c.l.b16 %v145
    %v178 = vunpack.c.l.b16 %v146
    %v179 = vunpack.c.l.b16 %v147
    %v180 = vunpack.c.l.b16 %v148
    %v181 = vunpack.c.l.b16 %v149
    %v182 = vpack.c.b16 %v167, %v166
    %v183 = vpack.c.b16 %v169, %v168
    %v184 = vpack.c.b16 %v171, %v170
    %v185 = vpack.c.b16 %v173, %v172
    %v186 = vpack.c.b16 %v175, %v174
    %v187 = vpack.c.b16 %v177, %v176
    %v188 = vpack.c.b16 %v179, %v178
    %v189 = vpack.c.b16 %v181, %v180
    %198 = vmatprep.subr.bf16.mxu0 0
    %199 = vmatpush1.bf16.msra.mxu0 %v182
    %200 = vmatprep.subr.bf16.mxu0 0
    %201 = vmatpush1.bf16.msra.mxu0 %v183
    %202 = vmatprep.subr.bf16.mxu0 0
    %203 = vmatpush1.bf16.msra.mxu0 %v184
    %204 = vmatprep.subr.bf16.mxu0 0
    %205 = vmatpush1.bf16.msra.mxu0 %v185
    %206 = vmatprep.subr.bf16.mxu0 0
    %207 = vmatpush1.bf16.msra.mxu0 %v186
    %208 = vmatprep.subr.bf16.mxu0 0
    %209 = vmatpush1.bf16.msra.mxu0 %v187
    %210 = vmatprep.subr.bf16.mxu0 0
    %211 = vmatpush1.bf16.msra.mxu0 %v188
    %212 = vmatprep.subr.bf16.mxu0 0
    %213 = vmatpush1.bf16.msra.mxu0 %v189
    %214 = vmatprep.subr.bf16.mxu0 0
    %215 = vmatpush1.bf16.msra.mxu0 0
    %216 = vmatprep.subr.bf16.mxu0 0
    %217 = vmatpush1.bf16.msra.mxu0 0
    %218 = vmatprep.subr.bf16.mxu0 0
    %219 = vmatpush1.bf16.msra.mxu0 0
    %220 = vmatprep.subr.bf16.mxu0 0
    %221 = vmatpush1.bf16.msra.mxu0 0
    %222 = vmatprep.subr.bf16.mxu0 0
    %223 = vmatpush1.bf16.msra.mxu0 0
    %224 = vmatprep.subr.bf16.mxu0 0
    %225 = vmatpush1.bf16.msra.mxu0 0
    %226 = vmatprep.subr.bf16.mxu0 0
    %227 = vmatpush1.bf16.msra.mxu0 0
    %228 = vmatprep.subr.bf16.mxu0 0
    %229 = vmatpush1.bf16.msra.mxu0 0
    %230 = vmatprep.mubr.bf16.mxu0 0
    %231 = vmatmul.mubr.bf16.gmra.mrb[0].mxu0 %v132
    %v232 = vpop.f32.mrb[0].mxu0
    %v233 = vadd.f32 0.0, %v232
    %v234 = vpop.f32.mrb[0].mxu0
    %v235 = vpop.f32.mrb[0].mxu0
    %v236 = vpop.f32.mrb[0].mxu0
    %237 = vdwg.mxu0
    %v238 = vmax.f32 %v233, 0.0
    %239 = vmax.xlane.f32.xlu0 %v238
    %v240 = vpop.xlane.xlu0 %239
    %v241 = vrot.slane %v240, 4
    %v242 = vmax.f32 %v240, %v241
    %v243 = vrot.slane %v242, 2
    %v244 = vmax.f32 %v242, %v243
    %v245 = vrot.slane %v244, 1
    %v246 = vmax.f32 %v244, %v245
    %s247 = vtos %v246
    %s248 = smul.f32 %s247, 0.5
    %p249 = scmp.gt.f32.partialorder %s248, 0.0
    %v250 = vrcp.pop 15.0
    %s251 = vtos %v250
    %s252 = smul.f32 %s248, %s251
    %s253 = scalar_select %p249, %s252, 1.0
    %v254 = vstv %s253
    %v255 = vrcp.pop %v254
    %s256 = vtos %v255
    %v257 = vstv %s256
    %v258 = vmul.f32 %v238, %v257
    %v259 = vround.ne.pseudo %v258
    %v260 = vmax.f32 %v259, 0.0
    %v261 = vmin.f32 %v260, 15.0
    %v262 = vstv %s253
    %v263 = vmul.f32 %v261, %v262
    %v264 = vpack.c.bf16 %v263, %v263
    %s265 = scalar_lea.vmem [#allocation2], 128
    %v266 = vld [vmem:[%s265] sm:$0xf]
    %v267 = vld [vmem:[%s265 + $0x4] sm:$0xf]
    %v268 = vld [vmem:[%s265 + $0x8] sm:$0xf]
    %v269 = vld [vmem:[%s265 + $0xc] sm:$0xf]
    %v270 = vld [vmem:[%s265 + $0x10] sm:$0xf]
    %v271 = vld [vmem:[%s265 + $0x14] sm:$0xf]
    %v272 = vld [vmem:[%s265 + $0x18] sm:$0xf]
    %v273 = vld [vmem:[%s265 + $0x1c] sm:$0xf]
    %v274 = vld [vmem:[%s265 + $0x20] sm:$0xf]
    %v275 = vld [vmem:[%s265 + $0x24] sm:$0xf]
    %v276 = vld [vmem:[%s265 + $0x28] sm:$0xf]
    %v277 = vld [vmem:[%s265 + $0x2c] sm:$0xf]
    %v278 = vld [vmem:[%s265 + $0x30] sm:$0xf]
    %v279 = vld [vmem:[%s265 + $0x34] sm:$0xf]
    %v280 = vld [vmem:[%s265 + $0x38] sm:$0xf]
    %v281 = vld [vmem:[%s265 + $0x3c] sm:$0xf]
    %v298 = vunpack.c.l.b16 %v266
    %v299 = vunpack.c.l.b16 %v267
    %v300 = vunpack.c.l.b16 %v268
    %v301 = vunpack.c.l.b16 %v269
    %v302 = vunpack.c.l.b16 %v270
    %v303 = vunpack.c.l.b16 %v271
    %v304 = vunpack.c.l.b16 %v272
    %v305 = vunpack.c.l.b16 %v273
    %v306 = vunpack.c.l.b16 %v274
    %v307 = vunpack.c.l.b16 %v275
    %v308 = vunpack.c.l.b16 %v276
    %v309 = vunpack.c.l.b16 %v277
    %v310 = vunpack.c.l.b16 %v278
    %v311 = vunpack.c.l.b16 %v279
    %v312 = vunpack.c.l.b16 %v280
    %v313 = vunpack.c.l.b16 %v281
    %v314 = vpack.c.b16 %v299, %v298
    %v315 = vpack.c.b16 %v301, %v300
    %v316 = vpack.c.b16 %v303, %v302
    %v317 = vpack.c.b16 %v305, %v304
    %v318 = vpack.c.b16 %v307, %v306
    %v319 = vpack.c.b16 %v309, %v308
    %v320 = vpack.c.b16 %v311, %v310
    %v321 = vpack.c.b16 %v313, %v312
    %330 = vmatprep.subr.bf16.mxu0 0
    %331 = vmatpush1.bf16.msra.mxu0 %v314
    %332 = vmatprep.subr.bf16.mxu0 0
    %333 = vmatpush1.bf16.msra.mxu0 %v315
    %334 = vmatprep.subr.bf16.mxu0 0
    %335 = vmatpush1.bf16.msra.mxu0 %v316
    %336 = vmatprep.subr.bf16.mxu0 0
    %337 = vmatpush1.bf16.msra.mxu0 %v317
    %338 = vmatprep.subr.bf16.mxu0 0
    %339 = vmatpush1.bf16.msra.mxu0 %v318
    %340 = vmatprep.subr.bf16.mxu0 0
    %341 = vmatpush1.bf16.msra.mxu0 %v319
    %342 = vmatprep.subr.bf16.mxu0 0
    %343 = vmatpush1.bf16.msra.mxu0 %v320
    %344 = vmatprep.subr.bf16.mxu0 0
    %345 = vmatpush1.bf16.msra.mxu0 %v321
    %346 = vmatprep.subr.bf16.mxu0 0
    %347 = vmatpush1.bf16.msra.mxu0 0
    %348 = vmatprep.subr.bf16.mxu0 0
    %349 = vmatpush1.bf16.msra.mxu0 0
    %350 = vmatprep.subr.bf16.mxu0 0
    %351 = vmatpush1.bf16.msra.mxu0 0
    %352 = vmatprep.subr.bf16.mxu0 0
    %353 = vmatpush1.bf16.msra.mxu0 0
    %354 = vmatprep.subr.bf16.mxu0 0
    %355 = vmatpush1.bf16.msra.mxu0 0
    %356 = vmatprep.subr.bf16.mxu0 0
    %357 = vmatpush1.bf16.msra.mxu0 0
    %358 = vmatprep.subr.bf16.mxu0 0
    %359 = vmatpush1.bf16.msra.mxu0 0
    %360 = vmatprep.subr.bf16.mxu0 0
    %361 = vmatpush1.bf16.msra.mxu0 0
    %362 = vmatprep.mubr.bf16.mxu0 0
    %363 = vmatmul.mubr.bf16.gmra.mrb[0].mxu0 %v264
    %v364 = vpop.f32.mrb[0].mxu0
    %v365 = vadd.f32 0.0, %v364
    %v366 = vpop.f32.mrb[0].mxu0
    %v367 = vpop.f32.mrb[0].mxu0
    %v368 = vpop.f32.mrb[0].mxu0
    %369 = vdwg.mxu0
    %v370 = vand.u32 2147483647, %v365
    %371 = vmax.xlane.f32.xlu0 %v370
    %v372 = vpop.xlane.xlu0 %371
    %v373 = vrot.slane %v372, 4
    %v374 = vmax.f32 %v372, %v373
    %v375 = vrot.slane %v374, 2
    %v376 = vmax.f32 %v374, %v375
    %v377 = vrot.slane %v376, 1
    %v378 = vmax.f32 %v376, %v377
    %s379 = vtos %v378
    %s380 = smul.f32 %s379, 0.5
    %p381 = scmp.gt.f32.partialorder %s380, 0.0
    %v382 = vrcp.pop 127.0
    %s383 = vtos %v382
    %s384 = smul.f32 %s380, %s383
    %s385 = scalar_select %p381, %s384, 1.0
    %v386 = vstv %s385
    %v387 = vrcp.pop %v386
    %s388 = vtos %v387
    %v389 = vstv %s388
    %v390 = vmul.f32 %v365, %v389
    %v391 = vround.ne.pseudo %v390
    %v392 = vmax.f32 %v391, -127.0
    %v393 = vmin.f32 %v392, 127.0
    %v394 = vstv %s385
    %v395 = vmul.f32 %v393, %v394
    %v396 = vmax.f32 %v395, 0.0
    %397 = vmax.xlane.f32.xlu0 %v396
    %v398 = vpop.xlane.xlu0 %397
    %v399 = vrot.slane %v398, 4
    %v400 = vmax.f32 %v398, %v399
    %v401 = vrot.slane %v400, 2
    %v402 = vmax.f32 %v400, %v401
    %v403 = vrot.slane %v402, 1
    %v404 = vmax.f32 %v402, %v403
    %s405 = vtos %v404
    %s406 = smul.f32 %s405, 0.5
    %p407 = scmp.gt.f32.partialorder %s406, 0.0
    %v408 = vrcp.pop 15.0
    %s409 = vtos %v408
    %s410 = smul.f32 %s406, %s409
    %s411 = scalar_select %p407, %s410, 1.0
    %v412 = vstv %s411
    %v413 = vrcp.pop %v412
    %s414 = vtos %v413
    %v415 = vstv %s414
    %v416 = vmul.f32 %v396, %v415
    %v417 = vround.ne.pseudo %v416
    %v418 = vmax.f32 %v417, 0.0
    %v419 = vmin.f32 %v418, 15.0
    %v420 = vstv %s411
    %v421 = vmul.f32 %v419, %v420
    %v422 = vpack.c.bf16 %v421, %v421
    %s423 = scalar_lea.vmem [#allocation2], 192
    %v424 = vld [vmem:[%s423] sm:$0xf]
    %v425 = vld [vmem:[%s423 + $0x4] sm:$0xf]
    %v426 = vld [vmem:[%s423 + $0x8] sm:$0xf]
    %v427 = vld [vmem:[%s423 + $0xc] sm:$0xf]
    %v428 = vld [vmem:[%s423 + $0x10] sm:$0xf]
    %v429 = vld [vmem:[%s423 + $0x14] sm:$0xf]
    %v430 = vld [vmem:[%s423 + $0x18] sm:$0xf]
    %v431 = vld [vmem:[%s423 + $0x1c] sm:$0xf]
    %v432 = vld [vmem:[%s423 + $0x20] sm:$0xf]
    %v433 = vld [vmem:[%s423 + $0x24] sm:$0xf]
    %v434 = vld [vmem:[%s423 + $0x28] sm:$0xf]
    %v435 = vld [vmem:[%s423 + $0x2c] sm:$0xf]
    %v436 = vld [vmem:[%s423 + $0x30] sm:$0xf]
    %v437 = vld [vmem:[%s423 + $0x34] sm:$0xf]
    %v438 = vld [vmem:[%s423 + $0x38] sm:$0xf]
    %v439 = vld [vmem:[%s423 + $0x3c] sm:$0xf]
    %v456 = vunpack.c.l.b16 %v424
    %v457 = vunpack.c.l.b16 %v425
    %v458 = vunpack.c.l.b16 %v426
    %v459 = vunpack.c.l.b16 %v427
    %v460 = vunpack.c.l.b16 %v428
    %v461 = vunpack.c.l.b16 %v429
    %v462 = vunpack.c.l.b16 %v430
    %v463 = vunpack.c.l.b16 %v431
    %v464 = vunpack.c.l.b16 %v432
    %v465 = vunpack.c.l.b16 %v433
    %v466 = vunpack.c.l.b16 %v434
    %v467 = vunpack.c.l.b16 %v435
    %v468 = vunpack.c.l.b16 %v436
    %v469 = vunpack.c.l.b16 %v437
    %v470 = vunpack.c.l.b16 %v438
    %v471 = vunpack.c.l.b16 %v439
    %v472 = vpack.c.b16 %v457, %v456
    %v473 = vpack.c.b16 %v459, %v458
    %v474 = vpack.c.b16 %v461, %v460
    %v475 = vpack.c.b16 %v463, %v462
    %v476 = vpack.c.b16 %v465, %v464
    %v477 = vpack.c.b16 %v467, %v466
    %v478 = vpack.c.b16 %v469, %v468
    %v479 = vpack.c.b16 %v471, %v470
    %488 = vmatprep.subr.bf16.mxu0 0
    %489 = vmatpush1.bf16.msra.mxu0 %v472
    %490 = vmatprep.subr.bf16.mxu0 0
    %491 = vmatpush1.bf16.msra.mxu0 %v473
    %492 = vmatprep.subr.bf16.mxu0 0
    %493 = vmatpush1.bf16.msra.mxu0 %v474
    %494 = vmatprep.subr.bf16.mxu0 0
    %495 = vmatpush1.bf16.msra.mxu0 %v475
    %496 = vmatprep.subr.bf16.mxu0 0
    %497 = vmatpush1.bf16.msra.mxu0 %v476
    %498 = vmatprep.subr.bf16.mxu0 0
    %499 = vmatpush1.bf16.msra.mxu0 %v477
    %500 = vmatprep.subr.bf16.mxu0 0
    %501 = vmatpush1.bf16.msra.mxu0 %v478
    %502 = vmatprep.subr.bf16.mxu0 0
    %503 = vmatpush1.bf16.msra.mxu0 %v479
    %504 = vmatprep.subr.bf16.mxu0 0
    %505 = vmatpush1.bf16.msra.mxu0 0
    %506 = vmatprep.subr.bf16.mxu0 0
    %507 = vmatpush1.bf16.msra.mxu0 0
    %508 = vmatprep.subr.bf16.mxu0 0
    %509 = vmatpush1.bf16.msra.mxu0 0
    %510 = vmatprep.subr.bf16.mxu0 0
    %511 = vmatpush1.bf16.msra.mxu0 0
    %512 = vmatprep.subr.bf16.mxu0 0
    %513 = vmatpush1.bf16.msra.mxu0 0
    %514 = vmatprep.subr.bf16.mxu0 0
    %515 = vmatpush1.bf16.msra.mxu0 0
    %516 = vmatprep.subr.bf16.mxu0 0
    %517 = vmatpush1.bf16.msra.mxu0 0
    %518 = vmatprep.subr.bf16.mxu0 0
    %519 = vmatpush1.bf16.msra.mxu0 0
    %520 = vmatprep.mubr.bf16.mxu0 0
    %521 = vmatmul.mubr.bf16.gmra.mrb[0].mxu0 %v422
    %v522 = vpop.f32.mrb[0].mxu0
    %v523 = vadd.f32 0.0, %v522
    %v524 = vpop.f32.mrb[0].mxu0
    %v525 = vpop.f32.mrb[0].mxu0
    %v526 = vpop.f32.mrb[0].mxu0
    %527 = vdwg.mxu0
    %v528 = vand.u32 2147483647, %v523
    %529 = vmax.xlane.f32.xlu0 %v528
    %v530 = vpop.xlane.xlu0 %529
    %v531 = vrot.slane %v530, 4
    %v532 = vmax.f32 %v530, %v531
    %v533 = vrot.slane %v532, 2
    %v534 = vmax.f32 %v532, %v533
    %v535 = vrot.slane %v534, 1
    %v536 = vmax.f32 %v534, %v535
    %s537 = vtos %v536
    %s538 = smul.f32 %s537, 0.5
    %p539 = scmp.gt.f32.partialorder %s538, 0.0
    %v540 = vrcp.pop 127.0
    %s541 = vtos %v540
    %s542 = smul.f32 %s538, %s541
    %s543 = scalar_select %p539, %s542, 1.0
    %v544 = vstv %s543
    %v545 = vrcp.pop %v544
    %s546 = vtos %v545
    %v547 = vstv %s546
    %v548 = vmul.f32 %v523, %v547
    %v549 = vround.ne.pseudo %v548
    %v550 = vmax.f32 %v549, -127.0
    %v551 = vmin.f32 %v550, 127.0
    %v552 = vstv %s543
    %v553 = vmul.f32 %v551, %v552
    %554 = vst [vmem:[%s2] sm:$0xff] %v553
    %555 = vst [vmem:[%s2 + $0x8] sm:$0xff] %v238
    %556 = vst [vmem:[%s2 + $0x10] sm:$0xff] %v396
    // Predicated region
    $region14: #{speech_model_fc_qn.1} parent=1 // pred_check
      _
    $region15: #{speech_model_fc_qn.1} parent=1 // pred_check_branch
      %558 = sbr.rel (0) target = $region17
    $region16: #{speech_model_fc_qn.1} parent=1 // pred_region
      _
    $region17: #{speech_model_fc_qn.1} parent=1 // pred_fallthru
      _
    // Predicated region
    $region18: #{speech_model_fc_qn.1} parent=1 // pred_check
      _
    $region19: #{speech_model_fc_qn.1} parent=1 // pred_check_branch
      %560 = sbr.rel (0) target = $region21
    $region20: #{speech_model_fc_qn.1} parent=1 // pred_region
      _
    $region21: #{speech_model_fc_qn.1} parent=1 // pred_fallthru
      _
    %561 = vsyncpa [#allocation3], 1

</llo_original>
